<compile_context>
chip_gen: v6e
topology: v6e:2x2x1
jax: 0.10.0
libtpu: 0.0.40
codegen_flags: <defaults>
</compile_context>

<pallas_src>
import jax
import jax.numpy as jnp
from jax.experimental import pallas as pl
from jax.experimental.pallas import tpu as pltpu


def make_kernel(HW):
    inv_hw = 1.0 / float(HW)

    def kernel(x_ref, a_ref, b_ref, o_ref):
        # x_ref: (NB, C, HW) in VMEM; a_ref: (C, C) folded conv matrix in VMEM;
        # b_ref: (1,) conv bias in SMEM.
        xf = x_ref[...].astype(jnp.float32)                  # (NB, C, HW)

        # Global average pool over the spatial (lane) axis.
        m = jnp.sum(xf, axis=-1) * inv_hw                    # (NB, C)

        # 1-D conv across channels == matmul with the banded matrix (MXU).
        z = jnp.dot(m, a_ref[...],
                    preferred_element_type=jnp.float32) + b_ref[0]   # (NB, C)

        # Sigmoid gate (EUP exp + reciprocal).
        g = 1.0 / (1.0 + jnp.exp(-z))                        # (NB, C)

        # Scale every spatial position of every channel by its gate.
        o_ref[...] = (xf * g[:, :, None]).astype(o_ref.dtype)

    return kernel


def eca_attention_pallas(x, conv_w, conv_b, *, kernel_size=3, nb=1):
    """x: (N, C, H, W); conv_w: (1, 1, k) Conv1d weight; conv_b: (1,) bias."""
    N, C, H, W = x.shape
    HW = H * W
    assert N % nb == 0, "nb must divide the batch"
    pad = (kernel_size - 1) // 2
    f32 = jnp.float32

    # ---- Fold the channel-wise Conv1d into a (C, C) banded matrix (wrapper-
    # side parameter algebra, done once):
    #   z[c] = b + sum_j w[j] * m[c + j - pad]  ==  z = m @ A + b
    # with A[t, c] = w[t - c + pad] when 0 <= t - c + pad < k else 0.
    w = conv_w.reshape(-1).astype(f32)                       # (k,)
    offs = jnp.arange(C)[None, :] - jnp.arange(C)[:, None] + pad   # (C, C): band[c, t]
    mask = (offs >= 0) & (offs < kernel_size)
    band = jnp.where(mask, w[jnp.clip(offs, 0, kernel_size - 1)], 0.0)  # band[c, t]
    a = band.T                                               # (C, C): z = m @ a

    x_flat = x.reshape(N, C, HW)                             # lane-dense input
    smem = pl.BlockSpec(memory_space=pltpu.MemorySpace.SMEM)

    out = pl.pallas_call(
        make_kernel(HW),
        out_shape=jax.ShapeDtypeStruct((N, C, HW), x.dtype),
        grid_spec=pltpu.PrefetchScalarGridSpec(
            num_scalar_prefetch=0,
            grid=(N // nb,),
            in_specs=[
                pl.BlockSpec((nb, C, HW), lambda n: (n, 0, 0)),  # x (VMEM)
                pl.BlockSpec((C, C), lambda n: (0, 0)),          # folded conv (VMEM)
                smem,                                            # bias scalar
            ],
            out_specs=pl.BlockSpec((nb, C, HW), lambda n: (n, 0, 0)),
        ),
        compiler_params=pltpu.CompilerParams(
            dimension_semantics=("parallel",)),
    )(x_flat, a, conv_b.reshape(1).astype(f32))

    return out.reshape(N, C, H, W)


def reference(x, conv_w, conv_b, *, kernel_size=3):
    """Pure-JAX (XLA) reference of ECAAttention.forward (inference)."""
    N, C, H, W = x.shape
    pad = (kernel_size - 1) // 2
    w = conv_w.reshape(-1).astype(jnp.float32)
    b = conv_b.reshape(()).astype(jnp.float32)
    m = jnp.mean(x.astype(jnp.float32), axis=(2, 3))         # (N, C) GAP
    mp = jnp.pad(m, ((0, 0), (pad, pad)))                    # zero pad channels
    z = b + sum(w[j] * mp[:, j:j + C] for j in range(kernel_size))
    g = jax.nn.sigmoid(z)                                    # (N, C)
    return (x.astype(jnp.float32) * g[:, :, None, None]).astype(x.dtype)


if __name__ == "__main__":
    N, C, H, W = 2, 32, 16, 16
    kernel_size = 3

    key = jax.random.PRNGKey(0)
    kx, kw, kb = jax.random.split(key, 3)
    x = jax.random.normal(kx, (N, C, H, W), jnp.float32)
    conv_w = 0.5 * jax.random.normal(kw, (1, 1, kernel_size), jnp.float32)
    conv_b = 0.1 * jax.random.normal(kb, (1,), jnp.float32)

    out = eca_attention_pallas(x, conv_w, conv_b, kernel_size=kernel_size)
    out = jax.block_until_ready(out)

    ref = reference(x, conv_w, conv_b, kernel_size=kernel_size)
    assert out.shape == x.shape
    err = float(jnp.max(jnp.abs(out - ref)))
    assert jnp.allclose(out, ref, atol=1e-5, rtol=1e-5), f"max abs err = {err}"
    print("KERNEL_OK")
</pallas_src>

<mosaic_0001>
module attributes {stable_mosaic.version = 11 : i64} {
  func.func @kernel(%arg0: i32, %arg1: memref<1x32x256xf32, #tpu.memory_space<vmem>>, %arg2: memref<32x32xf32, #tpu.memory_space<vmem>>, %arg3: memref<1xf32, #tpu.memory_space<smem>>, %arg4: memref<1x32x256xf32, #tpu.memory_space<vmem>>) attributes {dimension_semantics = [#tpu.dimension_semantics<parallel>], iteration_bounds = array<i64: 2>, scalar_prefetch = 0 : i64, scratch_operands = 0 : i64, tpu.core_type = #tpu.core_type<tc>, window_params = [{transform_indices = @transform_0, window_bounds = array<i64: 1, 32, 256>}, {pipeline_mode = #tpu.pipeline_mode<synchronous>, transform_indices = @transform_1, window_bounds = array<i64: 32, 32>}, {transform_indices = @transform_2, window_bounds = array<i64: 1>}, {transform_indices = @transform_3, window_bounds = array<i64: 1, 32, 256>}]} {
    %c0 = arith.constant 0 : index
    %c0_0 = arith.constant 0 : index
    %c0_1 = arith.constant 0 : index
    %0 = vector.load %arg1[%c0, %c0_0, %c0_1] : memref<1x32x256xf32, #tpu.memory_space<vmem>>, vector<1x32x256xf32>
    %cst = arith.constant dense<0.000000e+00> : vector<1x32xf32>
    %1 = vector.multi_reduction <add>, %0, %cst [2] : vector<1x32x256xf32> to vector<1x32xf32>
    %cst_2 = arith.constant 3.906250e-03 : f32
    %2 = vector.broadcast %cst_2 : f32 to vector<1x32xf32>
    %3 = arith.mulf %1, %2 : vector<1x32xf32>
    %c0_3 = arith.constant 0 : index
    %c0_4 = arith.constant 0 : index
    %4 = vector.load %arg2[%c0_3, %c0_4] : memref<32x32xf32, #tpu.memory_space<vmem>>, vector<32x32xf32>
    %cst_5 = arith.constant dense<0.000000e+00> : vector<1x32xf32>
    %5 = tpu.matmul %3, %4, %cst_5 {dimension_numbers = #tpu.dot_dimension_numbers<[1], [0], [0], [1], [0, 0, 1, 1], [], []>} : vector<1x32xf32>, vector<32x32xf32>, vector<1x32xf32> -> vector<1x32xf32>
    %c0_6 = arith.constant 0 : index
    %6 = memref.load %arg3[%c0_6] : memref<1xf32, #tpu.memory_space<smem>>
    %7 = vector.broadcast %6 : f32 to vector<1x32xf32>
    %8 = arith.addf %5, %7 : vector<1x32xf32>
    %cst_7 = arith.constant 0.000000e+00 : f32
    %9 = vector.broadcast %cst_7 : f32 to vector<1x32xf32>
    %10 = arith.subf %9, %8 : vector<1x32xf32>
    %11 = math.exp %10 : vector<1x32xf32>
    %cst_8 = arith.constant 1.000000e+00 : f32
    %12 = vector.broadcast %cst_8 : f32 to vector<1x32xf32>
    %13 = arith.addf %12, %11 : vector<1x32xf32>
    %cst_9 = arith.constant 1.000000e+00 : f32
    %14 = vector.broadcast %cst_9 : f32 to vector<1x32xf32>
    %15 = arith.divf %14, %13 : vector<1x32xf32>
    %16 = vector.shape_cast %15 : vector<1x32xf32> to vector<1x32x1xf32>
    %17 = vector.broadcast %16 : vector<1x32x1xf32> to vector<1x32x256xf32>
    %18 = arith.mulf %0, %17 : vector<1x32x256xf32>
    %c0_10 = arith.constant 0 : index
    %c0_11 = arith.constant 0 : index
    %c0_12 = arith.constant 0 : index
    %19 = vector.load %arg4[%c0_10, %c0_11, %c0_12] : memref<1x32x256xf32, #tpu.memory_space<vmem>>, vector<1x32x256xf32>
    tpu.vector_store %arg4[%c0_10, %c0_11, %c0_12], %18 {strides = array<i32>} : memref<1x32x256xf32, #tpu.memory_space<vmem>>, vector<1x32x256xf32>,
    return
  }
  func.func @transform_0(%arg0: i32) -> (i32, i32, i32) {
    %c0_i32 = arith.constant 0 : i32
    %c0_i32_0 = arith.constant 0 : i32
    %c0_i32_1 = arith.constant 0 : i32
    return %arg0, %c0_i32, %c0_i32_0 : i32, i32, i32
  }
  func.func @transform_1(%arg0: i32) -> (i32, i32) {
    %c0_i32 = arith.constant 0 : i32
    %c0_i32_0 = arith.constant 0 : i32
    %c0_i32_1 = arith.constant 0 : i32
    return %c0_i32, %c0_i32_0 : i32, i32
  }
  func.func @transform_2(%arg0: i32) -> i32 {
    %c0_i32 = arith.constant 0 : i32
    %c0_i32_0 = arith.constant 0 : i32
    return %c0_i32 : i32
  }
  func.func @transform_3(%arg0: i32) -> (i32, i32, i32) {
    %c0_i32 = arith.constant 0 : i32
    %c0_i32_0 = arith.constant 0 : i32
    %c0_i32_1 = arith.constant 0 : i32
    return %arg0, %c0_i32, %c0_i32_0 : i32, i32, i32
  }
}

</mosaic_0001>

<llo_original>
// kernel: tpu_custom_call.1
$region0: #{tpu_custom_call.1}
  #allocation0 [shape = 'u32[]', space=smem, size = 0x4, offset = 0x4, fixed_abs, tag = 'smem constant byte address 0x4 - core index']
  #allocation1 [shape = 'u32[144,128]{1,0:T(1,128)}', space=vmem, size = 0x12000, scoped, tag = 'internal scratch']
  #allocation2 [shape = 'f32[1]{0:T(128)S(6)}', space=smem, size = 0x200, scoped, tag = 'scoped memory for tpu_custom_call.1']
  %s0 = inlined_call_operand.hbm [shape: f32[2,32,256], index: 0, kind: input, shape index: {}]
  %s1 = inlined_call_operand.hbm [shape: f32[32,32], index: 1, kind: input, shape index: {}]
  %s2 = inlined_call_operand.<no memory space> [shape: f32[1], index: 2, kind: input, shape index: {}]
  %s3 = inlined_call_operand.hbm [shape: f32[2,32,256], index: 3, kind: output, shape index: {}]
  %s4 = sld [smem:[#allocation0]]
  $region53: #{tpu_custom_call.1} parent=0
    _
  %s6 = ssub.s32 1, %s4
  %s7 = scalar_select 0, %s6, %s4
  %8 = sst [smem:[#allocation2]] %s2
  $region1: #{tpu_custom_call.1} parent=0
    #allocation3 [shape = 'u8[65536]{0}', space=vmem, size = 0x10000, scoped, tag = 'input window, operand 0']
    #allocation4 [shape = 's32[2]{0}', space=sflag, size = 0x8, scoped, tag = 'scoped memory for tpu_custom_call.1']
    #allocation5 [shape = 's32[2]{0}', space=sflag, size = 0x8, scoped, tag = 'scoped memory for tpu_custom_call.1']
    #allocation6 [shape = 'u8[16384]{0}', space=vmem, size = 0x4000, scoped, tag = 'input window, operand 1, single buffered']
    #allocation7 [shape = 's32[1]{0}', space=sflag, size = 0x4, scoped, tag = 'scoped memory for tpu_custom_call.1']
    #allocation8 [shape = 'u8[65536]{0}', space=vmem, size = 0x10000, scoped, tag = 'output window, operand 0']
    %9 = vsyncpa [#allocation4], 0
    %s10 = scalar_lea.sflag [#allocation4], 1
    %11 = vsyncpa %s10, 0
    %12 = vsyncpa [#allocation7], 0
    %13 = vsyncpa [#allocation5], 0
    %s14 = scalar_lea.sflag [#allocation5], 1
    %15 = vsyncpa %s14, 0
    loop: start=0, step=1, limit=4
    $region2: #{tpu_custom_call.1} parent=1 // loop_pre_header
      _
    $region3: #{tpu_custom_call.1} parent=1 // loop_header
      %s17 = sphi 0, %s21
      %p18 = scmp.ge.s32.totalorder %s17, 4
      %s27 = sphi 0, %s29
      %s30 = sphi 0, %s27
      %s31 = sphi 0, %s30
      %s47 = sphi 0, %s31
      %s51 = sphi 0, %s51
      %s53 = sphi 0, %s51
      %s54 = sphi 0, %s53
      %s68 = sphi 0, %s54
      %s72 = sphi 0, %s72
      %s74 = sphi 0, %s72
      %s75 = sphi 0, %s74
      %s89 = sphi 0, %s75
      %s95 = sphi 0, %s97
      %s98 = sphi 0, %s95
      %s99 = sphi 0, %s98
      %s115 = sphi 0, %s99
    $region4: #{tpu_custom_call.1} parent=1 // loop_header_branch
      %20 = sbr.rel (%p18) target = $region8
    $region5: #{tpu_custom_call.1} parent=1 // loop_body
      %s22 = ssub.s32 %s17, 1
      %s23 = ssub.s32 %s17, 2
      %s24 = sadd.s32 %s17, 1
      %s25 = ssub.s32 %s17, %s24
      %p26 = scmp.eq.s32.totalorder %s25, 0
      %s28 = sadd.s32 %s27, 1
      %s29 = scalar_select %p26, %s27, %s28
      %p32 = pneg %p26
      %p33 = scmp.eq.s32.totalorder %s17, 1
      %p34 = por %p32, %p33
      %p35 = scmp.ne.s32.totalorder %s27, %s30
      %p36 = scmp.eq.s32.totalorder %s17, 0
      %p37 = por %p35, %p36
      %p38 = scmp.ne.s32.totalorder %s27, %s30
      %p39 = scmp.eq.s32.totalorder %s22, 1
      %p40 = por %p38, %p39
      %p41 = scmp.ne.s32.totalorder %s30, %s31
      %p42 = scmp.eq.s32.totalorder %s22, 0
      %p43 = por %p41, %p42
      %p44 = scmp.ne.s32.totalorder %s30, %s31
      %p45 = scmp.eq.s32.totalorder %s23, 1
      %p46 = por %p44, %p45
      %p48 = scmp.ne.s32.totalorder %s31, %s47
      %p49 = scmp.eq.s32.totalorder %s23, 0
      %p50 = por %p48, %p49
      %s52 = sadd.s32 %s51, 1
      %p55 = scmp.eq.s32.totalorder %s17, 1
      %p56 = scmp.ne.s32.totalorder %s51, %s53
      %p57 = scmp.eq.s32.totalorder %s17, 0
      %p58 = por %p56, %p57
      %p59 = scmp.ne.s32.totalorder %s51, %s53
      %p60 = scmp.eq.s32.totalorder %s22, 1
      %p61 = por %p59, %p60
      %p62 = scmp.ne.s32.totalorder %s53, %s54
      %p63 = scmp.eq.s32.totalorder %s22, 0
      %p64 = por %p62, %p63
      %p65 = scmp.ne.s32.totalorder %s53, %s54
      %p66 = scmp.eq.s32.totalorder %s23, 1
      %p67 = por %p65, %p66
      %p69 = scmp.ne.s32.totalorder %s54, %s68
      %p70 = scmp.eq.s32.totalorder %s23, 0
      %p71 = por %p69, %p70
      %s73 = sadd.s32 %s72, 1
      %p76 = scmp.eq.s32.totalorder %s17, 1
      %p77 = scmp.ne.s32.totalorder %s72, %s74
      %p78 = scmp.eq.s32.totalorder %s17, 0
      %p79 = por %p77, %p78
      %p80 = scmp.ne.s32.totalorder %s72, %s74
      %p81 = scmp.eq.s32.totalorder %s22, 1
      %p82 = por %p80, %p81
      %p83 = scmp.ne.s32.totalorder %s74, %s75
      %p84 = scmp.eq.s32.totalorder %s22, 0
      %p85 = por %p83, %p84
      %p86 = scmp.ne.s32.totalorder %s74, %s75
      %p87 = scmp.eq.s32.totalorder %s23, 1
      %p88 = por %p86, %p87
      %p90 = scmp.ne.s32.totalorder %s75, %s89
      %p91 = scmp.eq.s32.totalorder %s23, 0
      %p92 = por %p90, %p91
      %s93 = ssub.s32 %s17, %s24
      %p94 = scmp.eq.s32.totalorder %s93, 0
      %s96 = sadd.s32 %s95, 1
      %s97 = scalar_select %p94, %s95, %s96
      %p100 = pneg %p94
      %p101 = scmp.eq.s32.totalorder %s17, 1
      %p102 = por %p100, %p101
      %p103 = scmp.ne.s32.totalorder %s95, %s98
      %p104 = scmp.eq.s32.totalorder %s17, 0
      %p105 = por %p103, %p104
      %p106 = scmp.ne.s32.totalorder %s95, %s98
      %p107 = scmp.eq.s32.totalorder %s22, 1
      %p108 = por %p106, %p107
      %p109 = scmp.ne.s32.totalorder %s98, %s99
      %p110 = scmp.eq.s32.totalorder %s22, 0
      %p111 = por %p109, %p110
      %p112 = scmp.ne.s32.totalorder %s98, %s99
      %p113 = scmp.eq.s32.totalorder %s23, 1
      %p114 = por %p112, %p113
      %p116 = scmp.ne.s32.totalorder %s99, %s115
      %p117 = scmp.eq.s32.totalorder %s23, 0
      %p118 = por %p116, %p117
      %p119 = scmp.le.s32.totalorder 1, %s17
      %p120 = scmp.lt.s32.totalorder %s17, 3
      %p121 = pnand %p119, %p120
      %p122 = pneg %p121
      // Predicated region
      $region9: #{tpu_custom_call.1} parent=5 // pred_check
        _
      $region10: #{tpu_custom_call.1} parent=5 // pred_check_branch
        %124 = sbr.rel (%p121) target = $region12
      $region11: #{tpu_custom_call.1} parent=5 // pred_region
        %s125 = ssub.s32 %s17, 1
        // Predicated region
        $region13: #{tpu_custom_call.1} parent=11 // pred_check
          %p126 = pneg %p64
        $region14: #{tpu_custom_call.1} parent=11 // pred_check_branch
          %128 = sbr.rel (%p126) target = $region16
        $region15: #{tpu_custom_call.1} parent=11 // pred_region
          %s130 = ssub.s32 512, 512
          %131 = vsyncadd [#allocation7], %s130
          %s132 = sshll.u32 [#allocation6], 4
          %s133 = int_to_ptr.vmem [resolvable:$true] %s132
          %138 = dma.hbm_to_vmem [thread:$0]  %s1, 512, %s133, [#allocation7], 128, 128, 8
        $region16: #{tpu_custom_call.1} parent=11 // pred_fallthru
          _
        // Predicated region
        $region17: #{tpu_custom_call.1} parent=11 // pred_check
          %p139 = pneg %p85
        $region18: #{tpu_custom_call.1} parent=11 // pred_check_branch
          %141 = sbr.rel (%p139) target = $region20
        $region19: #{tpu_custom_call.1} parent=11 // pred_region
          _
        $region20: #{tpu_custom_call.1} parent=11 // pred_fallthru
          _
      $region12: #{tpu_custom_call.1} parent=5 // pred_fallthru
        _
      %p142 = scmp.lt.s32.totalorder %s17, 2
      // Predicated region
      $region21: #{tpu_custom_call.1} parent=5 // pred_check
        %p143 = pneg %p142
      $region22: #{tpu_custom_call.1} parent=5 // pred_check_branch
        %145 = sbr.rel (%p143) target = $region24
      $region23: #{tpu_custom_call.1} parent=5 // pred_region
        // Predicated region
        $region25: #{tpu_custom_call.1} parent=23 // pred_check
          %p146 = pneg %p37
        $region26: #{tpu_custom_call.1} parent=23 // pred_check_branch
          %148 = sbr.rel (%p146) target = $region28
        $region27: #{tpu_custom_call.1} parent=23 // pred_region
          %s149 = sand.u32 %s27, 1
          %s150 = scalar_lea.sflag [#allocation4], %s149
          %s151 = sand.u32 %s27, 1
          %s152 = smul.addr %s151, 64
          %s153 = scalar_lea.vmem [#allocation3], %s152
          %s155 = ssub.s32 1024, 1024
          %156 = vsyncadd %s150, %s155
          %s157 = smul.addr %s17, 8
          %s158 = smul.addr %s157, 128
          %s159 = scalar_lea.hbm %s0, %s158
          %s160 = sshll.u32 %s153, 4
          %s161 = int_to_ptr.vmem [resolvable:$true] %s160
          %166 = dma.hbm_to_vmem [thread:$0]  %s159, 1024, %s161, %s150, 256, 256, 16
        $region28: #{tpu_custom_call.1} parent=23 // pred_fallthru
          _
      $region24: #{tpu_custom_call.1} parent=5 // pred_fallthru
        _
      %p167 = scmp.le.s32.totalorder 1, %s17
      %p168 = scmp.lt.s32.totalorder %s17, 3
      %p169 = pnand %p167, %p168
      %p170 = pneg %p169
      // Predicated region
      $region29: #{tpu_custom_call.1} parent=5 // pred_check
        _
      $region30: #{tpu_custom_call.1} parent=5 // pred_check_branch
        %172 = sbr.rel (%p169) target = $region32
      $region31: #{tpu_custom_call.1} parent=5 // pred_region
        %s173 = ssub.s32 %s17, 1
        %s174 = sand.u32 %s30, 1
        %s175 = scalar_lea.sflag [#allocation4], %s174
        %s176 = sand.u32 %s30, 1
        %s177 = smul.addr %s176, 64
        %s178 = scalar_lea.vmem [#allocation3], %s177
        // Predicated region
        $region33: #{tpu_custom_call.1} parent=31 // pred_check
          %p179 = pneg %p43
        $region34: #{tpu_custom_call.1} parent=31 // pred_check_branch
          %181 = sbr.rel (%p179) target = $region36
        $region35: #{tpu_custom_call.1} parent=31 // pred_region
          %182 = dma.done %s175, 1024
        $region36: #{tpu_custom_call.1} parent=31 // pred_fallthru
          _
        // Predicated region
        $region37: #{tpu_custom_call.1} parent=31 // pred_check
          %p183 = pneg %p64
        $region38: #{tpu_custom_call.1} parent=31 // pred_check_branch
          %185 = sbr.rel (%p183) target = $region40
        $region39: #{tpu_custom_call.1} parent=31 // pred_region
          %186 = dma.done [#allocation7], 512
        $region40: #{tpu_custom_call.1} parent=31 // pred_fallthru
          _
        %s187 = sand.u32 %s30, 1
        %s188 = scalar_lea.sflag [#allocation4], %s187
        %s189 = sand.u32 %s30, 1
        %s190 = smul.addr %s189, 64
        %s191 = scalar_lea.vmem [#allocation3], %s190
        %p192 = pneg %p43
        %p193 = pneg %p40
        %p194 = pneg %p64
        %p195 = pneg %p61
        %p196 = pneg %p85
        %p197 = pneg %p82
        %p198 = pneg %p111
        %p199 = pneg %p108
        %s200 = sand.u32 %s98, 1
        %s201 = scalar_lea.sflag [#allocation5], %s200
        %s202 = sand.u32 %s98, 1
        %s203 = smul.addr %s202, 64
        %s204 = scalar_lea.vmem [#allocation8], %s203
        %v205 = vld [vmem:[%s178] sm:$0xff]
        %v206 = vld [vmem:[%s178 + $0x8] sm:$0xff]
        %v207 = vld [vmem:[%s178 + $0x10] sm:$0xff]
        %v208 = vld [vmem:[%s178 + $0x18] sm:$0xff]
        %v209 = vld [vmem:[%s178 + $0x20] sm:$0xff]
        %v210 = vld [vmem:[%s178 + $0x28] sm:$0xff]
        %v211 = vld [vmem:[%s178 + $0x30] sm:$0xff]
        %v212 = vld [vmem:[%s178 + $0x38] sm:$0xff]
        %v213 = vadd.f32 %v205, %v206
        %214 = vadd.xlane.f32.xlu0 %v213
        %v215 = vpop.xlane.xlu0 %214
        %v216 = vadd.f32 %v207, %v208
        %217 = vadd.xlane.f32.xlu0 %v216
        %v218 = vpop.xlane.xlu0 %217
        %v219 = vadd.f32 %v209, %v210
        %220 = vadd.xlane.f32.xlu0 %v219
        %v221 = vpop.xlane.xlu0 %220
        %v222 = vadd.f32 %v211, %v212
        %223 = vadd.xlane.f32.xlu0 %v222
        %v224 = vpop.xlane.xlu0 %223
        %v225 = vmul.f32 %v215, 0.00390625
        %v226 = vmul.f32 %v218, 0.00390625
        %v227 = vmul.f32 %v221, 0.00390625
        %v228 = vmul.f32 %v224, 0.00390625
        %v229 = vld [vmem:[#allocation6] sm:$0xff]
        %v230 = vld [vmem:[#allocation6 + $0x8] sm:$0xff]
        %v231 = vld [vmem:[#allocation6 + $0x10] sm:$0xff]
        %v232 = vld [vmem:[#allocation6 + $0x18] sm:$0xff]
        %s233 = sld [smem:[#allocation2]]
        %v234 = vstv %s233
        %v239 = vlaneseq
        %v240 = vand.u32 %v239, 127
        %v241 = vlaneseq
        %v242 = vshrl.u32 %v241, 7
        %v243 = vsub.s32 %v240, %v242
        %v244 = vrot.slane %v225, %v243
        %v245 = vadd.s32 %v240, 4294967288
        %v246 = vlaneseq
        %v247 = vshrl.u32 %v246, 7
        %v248 = vsub.s32 %v245, %v247
        %v249 = vrot.slane %v226, %v248
        %vm250 = vcmask 130112
        %v251 = vsel %vm250, %v249, %v244
        %v252 = vadd.s32 %v240, 4294967280
        %v253 = vlaneseq
        %v254 = vshrl.u32 %v253, 7
        %v255 = vsub.s32 %v252, %v254
        %v256 = vrot.slane %v227, %v255
        %vm257 = vcmask 195712
        %v258 = vsel %vm257, %v256, %v251
        %v259 = vadd.s32 %v240, 4294967272
        %v260 = vlaneseq
        %v261 = vshrl.u32 %v260, 7
        %v262 = vsub.s32 %v259, %v261
        %v263 = vrot.slane %v228, %v262
        %vm264 = vcmask 261312
        %v265 = vsel %vm264, %v263, %v258
        %vm266 = vcmask 261120
        %v267 = vsel %vm266, %v265, 0
        %269 = vmatprep.subr.mxu0 0.0
        %270 = vmatpush1.msra.mxu0 0.0
        %271 = vmatprep.subr.mxu0 0.0
        %272 = vmatpush1.msra.mxu0 0.0
        %273 = vmatprep.subr.mxu0 0.0
        %274 = vmatpush1.msra.mxu0 0.0
        %275 = vmatprep.subr.mxu0 0.0
        %276 = vmatpush1.msra.mxu0 0.0
        %277 = vmatprep.subr.mxu0 0.0
        %278 = vmatpush1.msra.mxu0 0.0
        %279 = vmatprep.subr.mxu0 0.0
        %280 = vmatpush1.msra.mxu0 0.0
        %281 = vmatprep.subr.mxu0 0.0
        %282 = vmatpush1.msra.mxu0 0.0
        %283 = vmatprep.subr.mxu0 0.0
        %284 = vmatpush1.msra.mxu0 0.0
        %285 = vmatprep.subr.mxu0 0.0
        %286 = vmatpush1.msra.mxu0 0.0
        %287 = vmatprep.subr.mxu0 0.0
        %288 = vmatpush1.msra.mxu0 0.0
        %289 = vmatprep.subr.mxu0 0.0
        %290 = vmatpush1.msra.mxu0 0.0
        %291 = vmatprep.subr.mxu0 0.0
        %292 = vmatpush1.msra.mxu0 0.0
        %293 = vmatprep.subr.mxu0 0.0
        %294 = vmatpush1.msra.mxu0 %v232
        %295 = vmatprep.subr.mxu0 0.0
        %296 = vmatpush1.msra.mxu0 %v231
        %297 = vmatprep.subr.mxu0 0.0
        %298 = vmatpush1.msra.mxu0 %v230
        %299 = vmatprep.subr.mxu0 0.0
        %300 = vmatpush1.msra.mxu0 %v229
        %301 = vmatprep.subr.mxu0 0.0
        %302 = vmatpush2.msra.mxu0 0.0
        %303 = vmatprep.subr.mxu0 0.0
        %304 = vmatpush2.msra.mxu0 0.0
        %305 = vmatprep.subr.mxu0 0.0
        %306 = vmatpush2.msra.mxu0 0.0
        %307 = vmatprep.subr.mxu0 0.0
        %308 = vmatpush2.msra.mxu0 0.0
        %309 = vmatprep.subr.mxu0 0.0
        %310 = vmatpush2.msra.mxu0 0.0
        %311 = vmatprep.subr.mxu0 0.0
        %312 = vmatpush2.msra.mxu0 0.0
        %313 = vmatprep.subr.mxu0 0.0
        %314 = vmatpush2.msra.mxu0 0.0
        %315 = vmatprep.subr.mxu0 0.0
        %316 = vmatpush2.msra.mxu0 0.0
        %317 = vmatprep.subr.mxu0 0.0
        %318 = vmatpush2.msra.mxu0 0.0
        %319 = vmatprep.subr.mxu0 0.0
        %320 = vmatpush2.msra.mxu0 0.0
        %321 = vmatprep.subr.mxu0 0.0
        %322 = vmatpush2.msra.mxu0 0.0
        %323 = vmatprep.subr.mxu0 0.0
        %324 = vmatpush2.msra.mxu0 0.0
        %325 = vmatprep.subr.mxu0 0.0
        %326 = vmatpush2.msra.mxu0 0.0
        %327 = vmatprep.subr.mxu0 0.0
        %328 = vmatpush2.msra.mxu0 0.0
        %329 = vmatprep.subr.mxu0 0.0
        %330 = vmatpush2.msra.mxu0 0.0
        %331 = vmatprep.subr.mxu0 0.0
        %332 = vmatpush2.msra.mxu0 0.0
        %333 = vmatprep.mubr.f32.mxu0 0.0
        %334 = vmatmul.mubr.f32.gmra.mxu0 %v267
        %v335 = vpop.f32.mrf.mxu0
        %v336 = vadd.f32 %v234, %v335
        %v337 = vpop.f32.mrf.mxu0
        %338 = vdwg.mxu0
        %v339 = vsub.f32 0.0, %v336
        %v340 = vmul.f32 %v339, 1.442695
        %v341 = vpow.pop %v340
        %v342 = vadd.f32 %v341, 1.0
        %v343 = vrcp.pop %v342
        %v344 = vmul.f32 1.0, %v343
        %v345 = vlaneseq
        %v346 = vshrl.u32 %v345, 7
        %v347 = vsub.s32 0, %v346
        %v348 = vrot.slane %v344, %v347
        %350 = vbcast.lane.b32.xlu0 %v348, 256
        %v351 = vpop.permute.xlu0 %350
        %s353 = sor.u32 256, 8
        %354 = vbcast.lane.b32.xlu0 %v348, %s353
        %v355 = vpop.permute.xlu0 %354
        %s357 = sor.u32 256, 16
        %358 = vbcast.lane.b32.xlu0 %v348, %s357
        %v359 = vpop.permute.xlu0 %358
        %s361 = sor.u32 256, 24
        %362 = vbcast.lane.b32.xlu0 %v348, %s361
        %v363 = vpop.permute.xlu0 %362
        %v364 = vmul.f32 %v205, %v351
        %v365 = vmul.f32 %v206, %v351
        %v366 = vmul.f32 %v207, %v355
        %v367 = vmul.f32 %v208, %v355
        %v368 = vmul.f32 %v209, %v359
        %v369 = vmul.f32 %v210, %v359
        %v370 = vmul.f32 %v211, %v363
        %v371 = vmul.f32 %v212, %v363
        %372 = vst [vmem:[%s204] sm:$0xff] %v364
        %373 = vst [vmem:[%s204 + $0x8] sm:$0xff] %v365
        %374 = vst [vmem:[%s204 + $0x10] sm:$0xff] %v366
        %375 = vst [vmem:[%s204 + $0x18] sm:$0xff] %v367
        %376 = vst [vmem:[%s204 + $0x20] sm:$0xff] %v368
        %377 = vst [vmem:[%s204 + $0x28] sm:$0xff] %v369
        %378 = vst [vmem:[%s204 + $0x30] sm:$0xff] %v370
        %379 = vst [vmem:[%s204 + $0x38] sm:$0xff] %v371
        %s380 = sand.u32 %s98, 1
        %s381 = scalar_lea.sflag [#allocation5], %s380
        %s382 = sand.u32 %s98, 1
        %s383 = smul.addr %s382, 64
        %s384 = scalar_lea.vmem [#allocation8], %s383
        // Predicated region
        $region41: #{tpu_custom_call.1} parent=31 // pred_check
          %p385 = pneg %p108
        $region42: #{tpu_custom_call.1} parent=31 // pred_check_branch
          %387 = sbr.rel (%p385) target = $region44
        $region43: #{tpu_custom_call.1} parent=31 // pred_region
          %s389 = ssub.s32 1024, 1024
          %390 = vsyncadd %s381, %s389
          %s391 = smul.addr %s22, 8
          %s392 = smul.addr %s391, 128
          %s393 = scalar_lea.hbm %s3, %s392
          %s394 = sshll.u32 %s384, 4
          %s395 = int_to_ptr.vmem [resolvable:$true] %s394
          %400 = dma.vmem_to_hbm [thread:$0]  %s395, 1024, %s393, %s381, 256, 256, 16
        $region44: #{tpu_custom_call.1} parent=31 // pred_fallthru
          _
      $region32: #{tpu_custom_call.1} parent=5 // pred_fallthru
        _
      %p401 = scmp.le.s32.totalorder 2, %s17
      // Predicated region
      $region45: #{tpu_custom_call.1} parent=5 // pred_check
        %p402 = pneg %p401
      $region46: #{tpu_custom_call.1} parent=5 // pred_check_branch
        %404 = sbr.rel (%p402) target = $region48
      $region47: #{tpu_custom_call.1} parent=5 // pred_region
        %s405 = ssub.s32 %s17, 2
        // Predicated region
        $region49: #{tpu_custom_call.1} parent=47 // pred_check
          %p406 = pneg %p114
        $region50: #{tpu_custom_call.1} parent=47 // pred_check_branch
          %408 = sbr.rel (%p406) target = $region52
        $region51: #{tpu_custom_call.1} parent=47 // pred_region
          %s409 = sand.u32 %s99, 1
          %s410 = scalar_lea.sflag [#allocation5], %s409
          %s411 = sand.u32 %s99, 1
          %s412 = smul.addr %s411, 64
          %s413 = scalar_lea.vmem [#allocation8], %s412
          %414 = dma.done %s410, 1024
        $region52: #{tpu_custom_call.1} parent=47 // pred_fallthru
          _
      $region48: #{tpu_custom_call.1} parent=5 // pred_fallthru
        _
    $region6: #{tpu_custom_call.1} parent=1 // loop_footer
      %s21 = sadd.s32 1, %s17
    $region7: #{tpu_custom_call.1} parent=1 // loop_footer_branch
      %16 = sbr.rel target = $region3
    $region8: #{tpu_custom_call.1} parent=1 // loop_exit
      _
    %415 = vsyncpa [#allocation4], 1
    %s416 = scalar_lea.sflag [#allocation4], 1
    %417 = vsyncpa %s416, 1
    %418 = vsyncpa [#allocation7], 1
    %419 = vsyncpa [#allocation5], 1
    %s420 = scalar_lea.sflag [#allocation5], 1
    %421 = vsyncpa %s420, 1

</llo_original>
